<compile_context>
chip_gen: v7x
topology: tpu7x:2x2x1
jax: 0.10.0
libtpu: 0.0.40
codegen_flags: <defaults>
</compile_context>

<pallas_src>
import jax
import jax.numpy as jnp
from jax import lax
from jax.experimental import pallas as pl
from jax.experimental.pallas import tpu as pltpu


def _make_fused_kernel(H, W):
    """Kernel specialized (at trace time) to an H x W input plane."""
    HW = H * W

    def kernel(w_ref, x_ref, b_ref, o_ref):
        # w_ref: (4*Cout, 4*Cin)  x_ref: (Cin, H*W)  b_ref: (4*Cout, 1)
        # o_ref: (4*Cout, H*W)
        x00 = x_ref[...]                                      # x[a, b]
        col = lax.broadcasted_iota(jnp.int32, x00.shape, 1)   # flat index a*W + b
        last_w = (col % W) == (W - 1)                         # b == W-1
        last_h = col >= (H - 1) * W                           # a == H-1
        zero = jnp.zeros_like(x00)
        # "out[i] = x[i+k]" is jnp.roll(x, -k); use the positive equivalent
        # HW-k.  Wrapped-around lanes land only where the mask zeroes them.
        x01 = jnp.where(last_w, zero, pltpu.roll(x00, HW - 1, axis=1))      # x[a, b+1]
        x10 = jnp.where(last_h, zero, pltpu.roll(x00, HW - W, axis=1))      # x[a+1, b]
        x11 = jnp.where(last_w | last_h, zero,
                        pltpu.roll(x00, HW - W - 1, axis=1))                # x[a+1, b+1]
        # sublane-tile-aligned concat (each piece is exactly 8 rows)
        x_all = jnp.concatenate([x00, x01, x10, x11], axis=0)  # (4*Cin, HW)
        acc = jnp.dot(w_ref[...], x_all, preferred_element_type=jnp.float32)
        o_ref[...] = (acc + b_ref[...]).astype(o_ref.dtype)    # bias already holds the +3

    return kernel


def _build_phase_weight(w_t):
    """w_t: (Cin, Cout, 3, 3) PyTorch ConvTranspose2d layout.
    Returns (4*Cout, 4*Cin) phase-GEMM weight.  Column blocks correspond to the
    shifted inputs [x00, x01, x10, x11]; row blocks to output phases
    [EE, EO, OE, OO] with phase = (oh%2, ow%2)."""
    Cin, Cout = w_t.shape[0], w_t.shape[1]
    zero = jnp.zeros((Cout, Cin), w_t.dtype)
    w = lambda kh, kw: w_t[:, :, kh, kw].T  # (Cout, Cin)
    rows = [
        jnp.concatenate([w(1, 1), zero,    zero,    zero   ], axis=1),  # EE
        jnp.concatenate([w(1, 2), w(1, 0), zero,    zero   ], axis=1),  # EO
        jnp.concatenate([w(2, 1), zero,    w(0, 1), zero   ], axis=1),  # OE
        jnp.concatenate([w(2, 2), w(2, 0), w(0, 2), w(0, 0)], axis=1),  # OO
    ]
    return jnp.concatenate(rows, axis=0)  # (4*Cout, 4*Cin)


@jax.jit
def conv_transpose_plus3(x, w_t, b):
    """x: (1, Cin, H, W), w_t: (Cin, Cout, 3, 3), b: (Cout,).
    ConvTranspose2d(stride=2, padding=1, K=3) followed by +3.
    Returns (1, Cout, 2H-1, 2W-1)."""
    N, Cin, H, W = x.shape
    Cout, K = w_t.shape[1], w_t.shape[2]
    # specialized: stride=2, padding=1 are hard-coded in the phase math
    assert N == 1 and K == 3, "kernel specialized for the module's config"
    OH, OW = 2 * H - 1, 2 * W - 1

    # Only tensor that crosses HBM for the kernel: a free contiguous reshape.
    x2d = x.reshape(Cin, H * W).astype(jnp.float32)                 # (8, 1024)
    w_all = _build_phase_weight(w_t).astype(jnp.float32)            # (8, 32)
    b_all = jnp.tile(b.astype(jnp.float32) + 3.0, 4).reshape(4 * Cout, 1)

    M, Kd, Ncols = 4 * Cout, 4 * Cin, H * W                         # 8, 32, 1024
    vmem = pltpu.MemorySpace.VMEM

    y = pl.pallas_call(
        _make_fused_kernel(H, W),
        out_shape=jax.ShapeDtypeStruct((M, Ncols), jnp.float32),
        # single invocation, whole arrays resident in VMEM (no grid, no tiling)
        in_specs=[
            pl.BlockSpec(memory_space=vmem),   # w_all  (8, 32)
            pl.BlockSpec(memory_space=vmem),   # x2d    (8, 1024)
            pl.BlockSpec(memory_space=vmem),   # b_all  (8, 1)
        ],
        out_specs=pl.BlockSpec(memory_space=vmem),
        cost_estimate=pl.CostEstimate(
            flops=2 * M * Kd * Ncols,
            bytes_accessed=(Cin * Ncols + M * Kd + M + M * Ncols) * 4,
            transcendentals=0,
        ),
    )(w_all, x2d, b_all)

    # interleave the 4 phases back to NCHW (tiny reshape/transpose, fuses in XLA)
    y = y.reshape(2, 2, Cout, H, W)                    # (dh, dw, co, a, b)
    y = jnp.transpose(y, (2, 3, 0, 4, 1)).reshape(Cout, 2 * H, 2 * W)
    return y[None, :, :OH, :OW]


def _reference(x, w_t, b, *, stride=2, padding=1):
    """Pure-JAX scatter reference for ConvTranspose2d + 3 (independent of the
    parity decomposition used by the kernel path)."""
    N, Cin, H, W = x.shape
    Cout, K = w_t.shape[1], w_t.shape[2]
    full_h = (H - 1) * stride + K
    full_w = (W - 1) * stride + K
    full = jnp.zeros((N, Cout, full_h, full_w), jnp.float32)
    for kh in range(K):
        for kw in range(K):
            contrib = jnp.einsum("nihw,io->nohw", x, w_t[:, :, kh, kw])
            full = full.at[
                :, :, kh:kh + (H - 1) * stride + 1:stride,
                kw:kw + (W - 1) * stride + 1:stride
            ].add(contrib)
    out = full[:, :, padding:full_h - padding, padding:full_w - padding]
    return out + b[None, :, None, None] + 3.0


if __name__ == "__main__":
    key = jax.random.PRNGKey(0)
    k_x, k_w, k_b = jax.random.split(key, 3)

    # module-implied shapes
    x1 = jax.random.normal(k_x, (1, 8, 32, 32), dtype=jnp.float32)
    # ConvTranspose2d(8, 2, 3): weight (in=8, out=2, 3, 3), bias (2,)
    w_t = jax.random.normal(k_w, (8, 2, 3, 3), dtype=jnp.float32) * 0.1
    b = jax.random.normal(k_b, (2,), dtype=jnp.float32) * 0.1

    out = conv_transpose_plus3(x1, w_t, b)
    out = jax.block_until_ready(out)

    ref = _reference(x1, w_t, b)
    assert out.shape == (1, 2, 63, 63), out.shape
    assert jnp.allclose(out, ref, rtol=1e-4, atol=1e-4), (
        float(jnp.max(jnp.abs(out - ref)))
    )
    print("KERNEL_OK")
</pallas_src>

<mosaic_0001>
module attributes {stable_mosaic.version = 11 : i64} {
  func.func @kernel(%arg0: memref<8x32xf32, #tpu.memory_space<vmem>>, %arg1: memref<8x1024xf32, #tpu.memory_space<vmem>>, %arg2: memref<8x1xf32, #tpu.memory_space<vmem>>, %arg3: memref<8x1024xf32, #tpu.memory_space<vmem>>) attributes {dimension_semantics = [], scalar_prefetch = 0 : i64, scratch_operands = 0 : i64, tpu.core_type = #tpu.core_type<tc>} {
    %c0 = arith.constant 0 : index
    %c0_0 = arith.constant 0 : index
    %0 = vector.load %arg1[%c0, %c0_0] : memref<8x1024xf32, #tpu.memory_space<vmem>>, vector<8x1024xf32>
    %1 = tpu.iota {dimensions = array<i32: 1>} : vector<8x1024xi32>
    %c32_i32 = arith.constant 32 : i32
    %c0_i32 = arith.constant 0 : i32
    %2 = arith.cmpi eq, %c32_i32, %c0_i32 : i32
    %c1_i32 = arith.constant 1 : i32
    %3 = arith.select %2, %c1_i32, %c32_i32 : i32
    %4 = vector.broadcast %3 : i32 to vector<8x1024xi32>
    %5 = arith.remsi %1, %4 : vector<8x1024xi32>
    %c0_i32_1 = arith.constant 0 : i32
    %6 = vector.broadcast %c0_i32_1 : i32 to vector<8x1024xi32>
    %7 = arith.cmpi ne, %5, %6 : vector<8x1024xi32>
    %c0_i32_2 = arith.constant 0 : i32
    %8 = vector.broadcast %c0_i32_2 : i32 to vector<8x1024xi32>
    %9 = arith.cmpi slt, %5, %8 : vector<8x1024xi32>
    %c0_i32_3 = arith.constant 0 : i32
    %10 = arith.cmpi slt, %3, %c0_i32_3 : i32
    %11 = vector.broadcast %10 : i1 to vector<8x1024xi1>
    %12 = vector.broadcast %11 : vector<8x1024xi1> to vector<8x1024xi1>
    %13 = arith.xori %9, %12 : vector<8x1024xi1>
    %14 = arith.andi %13, %7 : vector<8x1024xi1>
    %15 = vector.broadcast %3 : i32 to vector<8x1024xi32>
    %16 = arith.addi %5, %15 : vector<8x1024xi32>
    %17 = arith.select %14, %16, %5 : vector<8x1024xi1>, vector<8x1024xi32>
    %c31_i32 = arith.constant 31 : i32
    %18 = vector.broadcast %c31_i32 : i32 to vector<8x1024xi32>
    %19 = arith.cmpi eq, %17, %18 : vector<8x1024xi32>
    %c992_i32 = arith.constant 992 : i32
    %20 = vector.broadcast %c992_i32 : i32 to vector<8x1024xi32>
    %21 = arith.cmpi sge, %1, %20 : vector<8x1024xi32>
    %cst = arith.constant 0.000000e+00 : f32
    %22 = vector.broadcast %cst : f32 to vector<8x1024xf32>
    %c1023_i32 = arith.constant 1023 : i32
    %23 = tpu.dynamic_rotate %0 by %c1023_i32 dim 1 : vector<8x1024xf32>, i32 -> vector<8x1024xf32>
    %24 = arith.select %19, %22, %23 : vector<8x1024xi1>, vector<8x1024xf32>
    %c992_i32_4 = arith.constant 992 : i32
    %25 = tpu.dynamic_rotate %0 by %c992_i32_4 dim 1 : vector<8x1024xf32>, i32 -> vector<8x1024xf32>
    %26 = arith.select %21, %22, %25 : vector<8x1024xi1>, vector<8x1024xf32>
    %27 = arith.ori %19, %21 : vector<8x1024xi1>
    %c991_i32 = arith.constant 991 : i32
    %28 = tpu.dynamic_rotate %0 by %c991_i32 dim 1 : vector<8x1024xf32>, i32 -> vector<8x1024xf32>
    %29 = arith.select %27, %22, %28 : vector<8x1024xi1>, vector<8x1024xf32>
    %30 = tpu.concatenate %0, %24, %26, %29 in 0 : vector<8x1024xf32>, vector<8x1024xf32>, vector<8x1024xf32>, vector<8x1024xf32> -> vector<32x1024xf32>
    %c0_5 = arith.constant 0 : index
    %c0_6 = arith.constant 0 : index
    %31 = vector.load %arg0[%c0_5, %c0_6] : memref<8x32xf32, #tpu.memory_space<vmem>>, vector<8x32xf32>
    %cst_7 = arith.constant dense<0.000000e+00> : vector<8x1024xf32>
    %32 = tpu.matmul %31, %30, %cst_7 {dimension_numbers = #tpu.dot_dimension_numbers<[1], [0], [0], [1], [0, 0, 1, 1], [], []>} : vector<8x32xf32>, vector<32x1024xf32>, vector<8x1024xf32> -> vector<8x1024xf32>
    %c0_8 = arith.constant 0 : index
    %c0_9 = arith.constant 0 : index
    %33 = vector.load %arg2[%c0_8, %c0_9] : memref<8x1xf32, #tpu.memory_space<vmem>>, vector<8x1xf32>
    %34 = vector.broadcast %33 : vector<8x1xf32> to vector<8x1024xf32>
    %35 = arith.addf %32, %34 : vector<8x1024xf32>
    %c0_10 = arith.constant 0 : index
    %c0_11 = arith.constant 0 : index
    %36 = vector.load %arg3[%c0_10, %c0_11] : memref<8x1024xf32, #tpu.memory_space<vmem>>, vector<8x1024xf32>
    tpu.vector_store %arg3[%c0_10, %c0_11], %35 {strides = array<i32>} : memref<8x1024xf32, #tpu.memory_space<vmem>>, vector<8x1024xf32>,
    return
  }
}

</mosaic_0001>

<llo_original>
// kernel: tile.0
$region0: #{tile.0}
  %s0 = inlined_call_operand.vmem [shape: f32[4,2], index: 0, kind: input, shape index: {}]
  %s1 = inlined_call_operand.vmem [shape: f32[8,1], index: 1, kind: output, shape index: {}]
  $region1: #{tile.0} parent=0
    #allocation0 [shape = 'u8[4096]{0}', space=vmem, size = 0x1000, scoped, tag = 'scoped mem for input reshape']
    %s3 = sshllo.u32 0, 4
    %v4 = vld [vmem:[%s0] sm:%s3]
    %5 = vst [vmem:[#allocation0] sm:%s3] %v4
    %v6 = vld [vmem:[#allocation0] sm:$0xf]
    %vm7 = vcmask 7168
    %8 = vst.msk [vmem:[%s1] ss:$2 sm:$0xf] %vm7, %v6
    %v9 = vld [vmem:[#allocation0] sm:$0xf]
    %10 = vrot.lane.b32.xlu0 %v9, 127
    %v11 = vpop.permute.xlu0 %10
    %vm12 = vcmask 7168
    %s13 = scalar_lea.vmem %s1, 1
    %14 = vst.msk [vmem:[%s13] ss:$2 sm:$0xf] %vm12, %v11

// kernel: tile.8
$region0: #{tile.8}
  #allocation0 [shape = 's32[1]{0}', space=sflag, size = 0x4, scoped, tag = 'scoped memory for tile.8']
  %s0 = inlined_call_operand.vmem [shape: f32[2], index: 0, kind: input, shape index: {}]
  %s1 = inlined_call_operand.vmem [shape: f32[4,2], index: 1, kind: output, shape index: {}]
  // Predicated region
  $region2: #{tile.8} parent=0 // pred_check
    _
  $region3: #{tile.8} parent=0 // pred_check_branch
    %3 = sbr.rel (0) target = $region5
  $region4: #{tile.8} parent=0 // pred_region
    _
  $region5: #{tile.8} parent=0 // pred_fallthru
    _
  %v4 = vld [vmem:[%s0] ss:$0 sm:$0xff]
  %5 = vst [vmem:[%s1] sm:$0xf] %v4

// kernel: conv_transpose_plus3.1
$region0: #{conv_transpose_plus3.1}
  #allocation0 [shape = 'u32[]', space=smem, size = 0x4, offset = 0x4, fixed_abs, tag = 'smem constant byte address 0x4 - core index']
  #allocation1 [shape = 'u32[144,128]{1,0:T(1,128)}', space=vmem, size = 0x12000, scoped, tag = 'internal scratch']
  %s0 = inlined_call_operand.vmem [shape: f32[8,32], index: 0, kind: input, shape index: {}]
  %s1 = inlined_call_operand.vmem [shape: f32[8,1024], index: 1, kind: input, shape index: {}]
  %s2 = inlined_call_operand.vmem [shape: f32[8,1], index: 2, kind: input, shape index: {}]
  %s3 = inlined_call_operand.vmem [shape: f32[8,1024], index: 3, kind: output, shape index: {}]
  %s4 = sld [smem:[#allocation0]]
  $region22: #{conv_transpose_plus3.1} parent=0
    _
  %s6 = ssub.s32 1, %s4
  %s7 = scalar_select 0, %s6, %s4
  // Predicated region
  $region2: #{conv_transpose_plus3.1} parent=0 // pred_check
    _
  $region3: #{conv_transpose_plus3.1} parent=0 // pred_check_branch
    %9 = sbr.rel (0) target = $region5
  $region4: #{conv_transpose_plus3.1} parent=0 // pred_region
    _
  $region5: #{conv_transpose_plus3.1} parent=0 // pred_fallthru
    _
  // Predicated region
  $region6: #{conv_transpose_plus3.1} parent=0 // pred_check
    _
  $region7: #{conv_transpose_plus3.1} parent=0 // pred_check_branch
    %11 = sbr.rel (0) target = $region9
  $region8: #{conv_transpose_plus3.1} parent=0 // pred_region
    _
  $region9: #{conv_transpose_plus3.1} parent=0 // pred_fallthru
    _
  // Predicated region
  $region10: #{conv_transpose_plus3.1} parent=0 // pred_check
    _
  $region11: #{conv_transpose_plus3.1} parent=0 // pred_check_branch
    %13 = sbr.rel (0) target = $region13
  $region12: #{conv_transpose_plus3.1} parent=0 // pred_region
    _
  $region13: #{conv_transpose_plus3.1} parent=0 // pred_fallthru
    _
  %v14 = vld [vmem:[%s1] sm:$0xff]
  %v15 = vld [vmem:[%s1 + $0x8] sm:$0xff]
  %v16 = vld [vmem:[%s1 + $0x10] sm:$0xff]
  %v17 = vld [vmem:[%s1 + $0x18] sm:$0xff]
  %v18 = vld [vmem:[%s1 + $0x20] sm:$0xff]
  %v19 = vld [vmem:[%s1 + $0x28] sm:$0xff]
  %v20 = vld [vmem:[%s1 + $0x30] sm:$0xff]
  %v21 = vld [vmem:[%s1 + $0x38] sm:$0xff]
  %v22 = vlaneseq
  %v23 = vand.u32 %v22, 127
  %v24 = vadd.s32 %v23, 128
  %v25 = vadd.s32 %v23, 256
  %v26 = vadd.s32 %v23, 384
  %v27 = vadd.s32 %v23, 512
  %v28 = vadd.s32 %v23, 640
  %v29 = vadd.s32 %v23, 768
  %v30 = vadd.s32 %v23, 896
  %vm31 = vcmp.lt.s32.totalorder %v23, 0
  %v32 = vsub.s32 0, %v23
  %v33 = vsel %vm31, %v32, %v23
  %v34 = vshrl.u32 %v33, 5
  %v35 = vand.u32 %v33, 31
  %v36 = vsub.s32 0, %v35
  %v37 = vsel %vm31, %v36, %v35
  %vm38 = vcmp.lt.s32.totalorder %v24, 0
  %v39 = vsub.s32 0, %v24
  %v40 = vsel %vm38, %v39, %v24
  %v41 = vshrl.u32 %v40, 5
  %v42 = vand.u32 %v40, 31
  %v43 = vsub.s32 0, %v42
  %v44 = vsel %vm38, %v43, %v42
  %vm45 = vcmp.lt.s32.totalorder %v25, 0
  %v46 = vsub.s32 0, %v25
  %v47 = vsel %vm45, %v46, %v25
  %v48 = vshrl.u32 %v47, 5
  %v49 = vand.u32 %v47, 31
  %v50 = vsub.s32 0, %v49
  %v51 = vsel %vm45, %v50, %v49
  %vm52 = vcmp.lt.s32.totalorder %v26, 0
  %v53 = vsub.s32 0, %v26
  %v54 = vsel %vm52, %v53, %v26
  %v55 = vshrl.u32 %v54, 5
  %v56 = vand.u32 %v54, 31
  %v57 = vsub.s32 0, %v56
  %v58 = vsel %vm52, %v57, %v56
  %vm59 = vcmp.lt.s32.totalorder %v27, 0
  %v60 = vsub.s32 0, %v27
  %v61 = vsel %vm59, %v60, %v27
  %v62 = vshrl.u32 %v61, 5
  %v63 = vand.u32 %v61, 31
  %v64 = vsub.s32 0, %v63
  %v65 = vsel %vm59, %v64, %v63
  %vm66 = vcmp.lt.s32.totalorder %v28, 0
  %v67 = vsub.s32 0, %v28
  %v68 = vsel %vm66, %v67, %v28
  %v69 = vshrl.u32 %v68, 5
  %v70 = vand.u32 %v68, 31
  %v71 = vsub.s32 0, %v70
  %v72 = vsel %vm66, %v71, %v70
  %vm73 = vcmp.lt.s32.totalorder %v29, 0
  %v74 = vsub.s32 0, %v29
  %v75 = vsel %vm73, %v74, %v29
  %v76 = vshrl.u32 %v75, 5
  %v77 = vand.u32 %v75, 31
  %v78 = vsub.s32 0, %v77
  %v79 = vsel %vm73, %v78, %v77
  %vm80 = vcmp.lt.s32.totalorder %v30, 0
  %v81 = vsub.s32 0, %v30
  %v82 = vsel %vm80, %v81, %v30
  %v83 = vshrl.u32 %v82, 5
  %v84 = vand.u32 %v82, 31
  %v85 = vsub.s32 0, %v84
  %v86 = vsel %vm80, %v85, %v84
  %vm87 = vcmp.ne.s32.totalorder %v37, 0
  %vm88 = vcmp.ne.s32.totalorder %v44, 0
  %vm89 = vcmp.ne.s32.totalorder %v51, 0
  %vm90 = vcmp.ne.s32.totalorder %v58, 0
  %vm91 = vcmp.ne.s32.totalorder %v65, 0
  %vm92 = vcmp.ne.s32.totalorder %v72, 0
  %vm93 = vcmp.ne.s32.totalorder %v79, 0
  %vm94 = vcmp.ne.s32.totalorder %v86, 0
  %vm95 = vcmp.lt.s32.totalorder %v37, 0
  %vm96 = vcmp.lt.s32.totalorder %v44, 0
  %vm97 = vcmp.lt.s32.totalorder %v51, 0
  %vm98 = vcmp.lt.s32.totalorder %v58, 0
  %vm99 = vcmp.lt.s32.totalorder %v65, 0
  %vm100 = vcmp.lt.s32.totalorder %v72, 0
  %vm101 = vcmp.lt.s32.totalorder %v79, 0
  %vm102 = vcmp.lt.s32.totalorder %v86, 0
  %vm103 = vmand %vm95, %vm87
  %vm104 = vmand %vm96, %vm88
  %vm105 = vmand %vm97, %vm89
  %vm106 = vmand %vm98, %vm90
  %vm107 = vmand %vm99, %vm91
  %vm108 = vmand %vm100, %vm92
  %vm109 = vmand %vm101, %vm93
  %vm110 = vmand %vm102, %vm94
  %v111 = vadd.s32 %v37, 32
  %v112 = vadd.s32 %v44, 32
  %v113 = vadd.s32 %v51, 32
  %v114 = vadd.s32 %v58, 32
  %v115 = vadd.s32 %v65, 32
  %v116 = vadd.s32 %v72, 32
  %v117 = vadd.s32 %v79, 32
  %v118 = vadd.s32 %v86, 32
  %v119 = vsel %vm103, %v111, %v37
  %v120 = vsel %vm104, %v112, %v44
  %v121 = vsel %vm105, %v113, %v51
  %v122 = vsel %vm106, %v114, %v58
  %v123 = vsel %vm107, %v115, %v65
  %v124 = vsel %vm108, %v116, %v72
  %v125 = vsel %vm109, %v117, %v79
  %v126 = vsel %vm110, %v118, %v86
  %vm127 = vcmp.eq.s32.totalorder %v119, 31
  %vm128 = vcmp.eq.s32.totalorder %v120, 31
  %vm129 = vcmp.eq.s32.totalorder %v121, 31
  %vm130 = vcmp.eq.s32.totalorder %v122, 31
  %vm131 = vcmp.eq.s32.totalorder %v123, 31
  %vm132 = vcmp.eq.s32.totalorder %v124, 31
  %vm133 = vcmp.eq.s32.totalorder %v125, 31
  %vm134 = vcmp.eq.s32.totalorder %v126, 31
  %vm135 = vcmp.ge.s32.totalorder %v23, 992
  %vm136 = vcmp.ge.s32.totalorder %v24, 992
  %vm137 = vcmp.ge.s32.totalorder %v25, 992
  %vm138 = vcmp.ge.s32.totalorder %v26, 992
  %vm139 = vcmp.ge.s32.totalorder %v27, 992
  %vm140 = vcmp.ge.s32.totalorder %v28, 992
  %vm141 = vcmp.ge.s32.totalorder %v29, 992
  %vm142 = vcmp.ge.s32.totalorder %v30, 992
  %143 = vrot.lane.b32.xlu0 %v14, 127
  %v144 = vpop.permute.xlu0 %143
  %145 = vrot.lane.b32.xlu0 %v15, 127
  %v146 = vpop.permute.xlu0 %145
  %147 = vrot.lane.b32.xlu0 %v16, 127
  %v148 = vpop.permute.xlu0 %147
  %149 = vrot.lane.b32.xlu0 %v17, 127
  %v150 = vpop.permute.xlu0 %149
  %151 = vrot.lane.b32.xlu0 %v18, 127
  %v152 = vpop.permute.xlu0 %151
  %153 = vrot.lane.b32.xlu0 %v19, 127
  %v154 = vpop.permute.xlu0 %153
  %155 = vrot.lane.b32.xlu0 %v20, 127
  %v156 = vpop.permute.xlu0 %155
  %157 = vrot.lane.b32.xlu0 %v21, 127
  %v158 = vpop.permute.xlu0 %157
  %vm159 = vcmp.lt.s32.totalorder %v23, 127
  %v160 = vsel %vm159, %v156, %v158
  %v161 = vsel %vm159, %v154, %v156
  %v162 = vsel %vm159, %v152, %v154
  %v163 = vsel %vm159, %v150, %v152
  %v164 = vsel %vm159, %v148, %v150
  %v165 = vsel %vm159, %v146, %v148
  %v166 = vsel %vm159, %v144, %v146
  %v167 = vsel %vm159, %v158, %v144
  %v168 = vsel %vm127, 0.0, %v166
  %v169 = vsel %vm128, 0.0, %v165
  %v170 = vsel %vm129, 0.0, %v164
  %v171 = vsel %vm130, 0.0, %v163
  %v172 = vsel %vm131, 0.0, %v162
  %v173 = vsel %vm132, 0.0, %v161
  %v174 = vsel %vm133, 0.0, %v160
  %v175 = vsel %vm134, 0.0, %v167
  %176 = vrot.lane.b32.xlu0 %v14, 96
  %v177 = vpop.permute.xlu0 %176
  %178 = vrot.lane.b32.xlu0 %v15, 96
  %v179 = vpop.permute.xlu0 %178
  %180 = vrot.lane.b32.xlu0 %v16, 96
  %v181 = vpop.permute.xlu0 %180
  %182 = vrot.lane.b32.xlu0 %v17, 96
  %v183 = vpop.permute.xlu0 %182
  %184 = vrot.lane.b32.xlu0 %v18, 96
  %v185 = vpop.permute.xlu0 %184
  %186 = vrot.lane.b32.xlu0 %v19, 96
  %v187 = vpop.permute.xlu0 %186
  %188 = vrot.lane.b32.xlu0 %v20, 96
  %v189 = vpop.permute.xlu0 %188
  %190 = vrot.lane.b32.xlu0 %v21, 96
  %v191 = vpop.permute.xlu0 %190
  %vm192 = vcmp.lt.s32.totalorder %v23, 96
  %v193 = vsel %vm192, %v189, %v191
  %v194 = vsel %vm192, %v187, %v189
  %v195 = vsel %vm192, %v185, %v187
  %v196 = vsel %vm192, %v183, %v185
  %v197 = vsel %vm192, %v181, %v183
  %v198 = vsel %vm192, %v179, %v181
  %v199 = vsel %vm192, %v177, %v179
  %v200 = vsel %vm192, %v191, %v177
  %v201 = vsel %vm135, 0.0, %v199
  %v202 = vsel %vm136, 0.0, %v198
  %v203 = vsel %vm137, 0.0, %v197
  %v204 = vsel %vm138, 0.0, %v196
  %v205 = vsel %vm139, 0.0, %v195
  %v206 = vsel %vm140, 0.0, %v194
  %v207 = vsel %vm141, 0.0, %v193
  %v208 = vsel %vm142, 0.0, %v200
  %vm209 = vmor %vm127, %vm135
  %vm210 = vmor %vm128, %vm136
  %vm211 = vmor %vm129, %vm137
  %vm212 = vmor %vm130, %vm138
  %vm213 = vmor %vm131, %vm139
  %vm214 = vmor %vm132, %vm140
  %vm215 = vmor %vm133, %vm141
  %vm216 = vmor %vm134, %vm142
  %217 = vrot.lane.b32.xlu0 %v14, 95
  %v218 = vpop.permute.xlu0 %217
  %219 = vrot.lane.b32.xlu0 %v15, 95
  %v220 = vpop.permute.xlu0 %219
  %221 = vrot.lane.b32.xlu0 %v16, 95
  %v222 = vpop.permute.xlu0 %221
  %223 = vrot.lane.b32.xlu0 %v17, 95
  %v224 = vpop.permute.xlu0 %223
  %225 = vrot.lane.b32.xlu0 %v18, 95
  %v226 = vpop.permute.xlu0 %225
  %227 = vrot.lane.b32.xlu0 %v19, 95
  %v228 = vpop.permute.xlu0 %227
  %229 = vrot.lane.b32.xlu0 %v20, 95
  %v230 = vpop.permute.xlu0 %229
  %231 = vrot.lane.b32.xlu0 %v21, 95
  %v232 = vpop.permute.xlu0 %231
  %vm233 = vcmp.lt.s32.totalorder %v23, 95
  %v234 = vsel %vm233, %v230, %v232
  %v235 = vsel %vm233, %v228, %v230
  %v236 = vsel %vm233, %v226, %v228
  %v237 = vsel %vm233, %v224, %v226
  %v238 = vsel %vm233, %v222, %v224
  %v239 = vsel %vm233, %v220, %v222
  %v240 = vsel %vm233, %v218, %v220
  %v241 = vsel %vm233, %v232, %v218
  %v242 = vsel %vm209, 0.0, %v240
  %v243 = vsel %vm210, 0.0, %v239
  %v244 = vsel %vm211, 0.0, %v238
  %v245 = vsel %vm212, 0.0, %v237
  %v246 = vsel %vm213, 0.0, %v236
  %v247 = vsel %vm214, 0.0, %v235
  %v248 = vsel %vm215, 0.0, %v234
  %v249 = vsel %vm216, 0.0, %v241
  %v250 = vld [vmem:[%s0] sm:$0xff]
  %v251 = vld [vmem:[%s2] sm:$0xff]
  %253 = vset.pattern.permute.xlu0 0
  %254 = vperm.xlu0 %253, %v251
  %v255 = vpop.permute.xlu0 %254
  %vm257 = vcmask 261120
  %v259 = vsel %vm257, %v250, 0
  %261 = vmatprep.subr.mxu0 %v15
  %262 = vmatpush1.msra.mxu0 %v14
  %263 = vmatprep.subr.mxu0 %v169
  %264 = vmatpush1.msra.mxu0 %v168
  %265 = vmatprep.subr.mxu0 %v202
  %266 = vmatpush1.msra.mxu0 %v201
  %267 = vmatprep.subr.mxu0 %v243
  %268 = vmatpush1.msra.mxu0 %v242
  %269 = vmatprep.subr.mxu0 0.0
  %270 = vmatpush1.msra.mxu0 0.0
  %271 = vmatprep.subr.mxu0 0.0
  %272 = vmatpush1.msra.mxu0 0.0
  %273 = vmatprep.subr.mxu0 0.0
  %274 = vmatpush1.msra.mxu0 0.0
  %275 = vmatprep.subr.mxu0 0.0
  %276 = vmatpush1.msra.mxu0 0.0
  %277 = vmatprep.subr.mxu0 0.0
  %278 = vmatpush1.msra.mxu0 0.0
  %279 = vmatprep.subr.mxu0 0.0
  %280 = vmatpush1.msra.mxu0 0.0
  %281 = vmatprep.subr.mxu0 0.0
  %282 = vmatpush1.msra.mxu0 0.0
  %283 = vmatprep.subr.mxu0 0.0
  %284 = vmatpush1.msra.mxu0 0.0
  %285 = vmatprep.subr.mxu0 0.0
  %286 = vmatpush1.msra.mxu0 0.0
  %287 = vmatprep.subr.mxu0 0.0
  %288 = vmatpush1.msra.mxu0 0.0
  %289 = vmatprep.subr.mxu0 0.0
  %290 = vmatpush1.msra.mxu0 0.0
  %291 = vmatprep.subr.mxu0 0.0
  %292 = vmatpush1.msra.mxu0 0.0
  %293 = vmatprep.subr.mxu0 0.0
  %294 = vmatpush1.msra.mxu0 0.0
  %295 = vmatprep.subr.mxu0 0.0
  %296 = vmatpush1.msra.mxu0 0.0
  %297 = vmatprep.subr.mxu0 0.0
  %298 = vmatpush1.msra.mxu0 0.0
  %299 = vmatprep.subr.mxu0 0.0
  %300 = vmatpush1.msra.mxu0 0.0
  %301 = vmatprep.subr.mxu0 0.0
  %302 = vmatpush1.msra.mxu0 0.0
  %303 = vmatprep.subr.mxu0 0.0
  %304 = vmatpush1.msra.mxu0 0.0
  %305 = vmatprep.subr.mxu0 0.0
  %306 = vmatpush1.msra.mxu0 0.0
  %307 = vmatprep.subr.mxu0 0.0
  %308 = vmatpush1.msra.mxu0 0.0
  %309 = vmatprep.subr.mxu0 0.0
  %310 = vmatpush1.msra.mxu0 0.0
  %311 = vmatprep.subr.mxu0 0.0
  %312 = vmatpush1.msra.mxu0 0.0
  %313 = vmatprep.subr.mxu0 0.0
  %314 = vmatpush1.msra.mxu0 0.0
  %315 = vmatprep.subr.mxu0 0.0
  %316 = vmatpush1.msra.mxu0 0.0
  %317 = vmatprep.subr.mxu0 0.0
  %318 = vmatpush1.msra.mxu0 0.0
  %319 = vmatprep.subr.mxu0 0.0
  %320 = vmatpush1.msra.mxu0 0.0
  %321 = vmatprep.subr.mxu0 0.0
  %322 = vmatpush1.msra.mxu0 0.0
  %323 = vmatprep.subr.mxu0 0.0
  %324 = vmatpush1.msra.mxu0 0.0
  %325 = vmatprep.mubr.f32.mxu0 0.0
  %326 = vmatmul.mubr.f32.gmra.mrb[0].mxu0 %v259
  %v327 = vpop.f32.mrb[0].mxu0
  %v328 = vadd.f32 %v255, %v327
  %v329 = vpop.f32.mrb[0].mxu0
  %v330 = vadd.f32 %v255, %v329
  %331 = vdwg.mxu0
  %332 = vmatprep.subr.mxu0 %v17
  %333 = vmatpush1.msra.mxu0 %v16
  %334 = vmatprep.subr.mxu0 %v171
  %335 = vmatpush1.msra.mxu0 %v170
  %336 = vmatprep.subr.mxu0 %v204
  %337 = vmatpush1.msra.mxu0 %v203
  %338 = vmatprep.subr.mxu0 %v245
  %339 = vmatpush1.msra.mxu0 %v244
  %340 = vmatprep.subr.mxu0 0.0
  %341 = vmatpush1.msra.mxu0 0.0
  %342 = vmatprep.subr.mxu0 0.0
  %343 = vmatpush1.msra.mxu0 0.0
  %344 = vmatprep.subr.mxu0 0.0
  %345 = vmatpush1.msra.mxu0 0.0
  %346 = vmatprep.subr.mxu0 0.0
  %347 = vmatpush1.msra.mxu0 0.0
  %348 = vmatprep.subr.mxu0 0.0
  %349 = vmatpush1.msra.mxu0 0.0
  %350 = vmatprep.subr.mxu0 0.0
  %351 = vmatpush1.msra.mxu0 0.0
  %352 = vmatprep.subr.mxu0 0.0
  %353 = vmatpush1.msra.mxu0 0.0
  %354 = vmatprep.subr.mxu0 0.0
  %355 = vmatpush1.msra.mxu0 0.0
  %356 = vmatprep.subr.mxu0 0.0
  %357 = vmatpush1.msra.mxu0 0.0
  %358 = vmatprep.subr.mxu0 0.0
  %359 = vmatpush1.msra.mxu0 0.0
  %360 = vmatprep.subr.mxu0 0.0
  %361 = vmatpush1.msra.mxu0 0.0
  %362 = vmatprep.subr.mxu0 0.0
  %363 = vmatpush1.msra.mxu0 0.0
  %364 = vmatprep.subr.mxu0 0.0
  %365 = vmatpush1.msra.mxu0 0.0
  %366 = vmatprep.subr.mxu0 0.0
  %367 = vmatpush1.msra.mxu0 0.0
  %368 = vmatprep.subr.mxu0 0.0
  %369 = vmatpush1.msra.mxu0 0.0
  %370 = vmatprep.subr.mxu0 0.0
  %371 = vmatpush1.msra.mxu0 0.0
  %372 = vmatprep.subr.mxu0 0.0
  %373 = vmatpush1.msra.mxu0 0.0
  %374 = vmatprep.subr.mxu0 0.0
  %375 = vmatpush1.msra.mxu0 0.0
  %376 = vmatprep.subr.mxu0 0.0
  %377 = vmatpush1.msra.mxu0 0.0
  %378 = vmatprep.subr.mxu0 0.0
  %379 = vmatpush1.msra.mxu0 0.0
  %380 = vmatprep.subr.mxu0 0.0
  %381 = vmatpush1.msra.mxu0 0.0
  %382 = vmatprep.subr.mxu0 0.0
  %383 = vmatpush1.msra.mxu0 0.0
  %384 = vmatprep.subr.mxu0 0.0
  %385 = vmatpush1.msra.mxu0 0.0
  %386 = vmatprep.subr.mxu0 0.0
  %387 = vmatpush1.msra.mxu0 0.0
  %388 = vmatprep.subr.mxu0 0.0
  %389 = vmatpush1.msra.mxu0 0.0
  %390 = vmatprep.subr.mxu0 0.0
  %391 = vmatpush1.msra.mxu0 0.0
  %392 = vmatprep.subr.mxu0 0.0
  %393 = vmatpush1.msra.mxu0 0.0
  %394 = vmatprep.subr.mxu0 0.0
  %395 = vmatpush1.msra.mxu0 0.0
  %396 = vmatprep.mubr.f32.mxu0 0.0
  %397 = vmatmul.mubr.f32.gmra.mrb[0].mxu0 %v259
  %v398 = vpop.f32.mrb[0].mxu0
  %v399 = vadd.f32 %v255, %v398
  %v400 = vpop.f32.mrb[0].mxu0
  %v401 = vadd.f32 %v255, %v400
  %402 = vdwg.mxu0
  %403 = vmatprep.subr.mxu0 %v19
  %404 = vmatpush1.msra.mxu0 %v18
  %405 = vmatprep.subr.mxu0 %v173
  %406 = vmatpush1.msra.mxu0 %v172
  %407 = vmatprep.subr.mxu0 %v206
  %408 = vmatpush1.msra.mxu0 %v205
  %409 = vmatprep.subr.mxu0 %v247
  %410 = vmatpush1.msra.mxu0 %v246
  %411 = vmatprep.subr.mxu0 0.0
  %412 = vmatpush1.msra.mxu0 0.0
  %413 = vmatprep.subr.mxu0 0.0
  %414 = vmatpush1.msra.mxu0 0.0
  %415 = vmatprep.subr.mxu0 0.0
  %416 = vmatpush1.msra.mxu0 0.0
  %417 = vmatprep.subr.mxu0 0.0
  %418 = vmatpush1.msra.mxu0 0.0
  %419 = vmatprep.subr.mxu0 0.0
  %420 = vmatpush1.msra.mxu0 0.0
  %421 = vmatprep.subr.mxu0 0.0
  %422 = vmatpush1.msra.mxu0 0.0
  %423 = vmatprep.subr.mxu0 0.0
  %424 = vmatpush1.msra.mxu0 0.0
  %425 = vmatprep.subr.mxu0 0.0
  %426 = vmatpush1.msra.mxu0 0.0
  %427 = vmatprep.subr.mxu0 0.0
  %428 = vmatpush1.msra.mxu0 0.0
  %429 = vmatprep.subr.mxu0 0.0
  %430 = vmatpush1.msra.mxu0 0.0
  %431 = vmatprep.subr.mxu0 0.0
  %432 = vmatpush1.msra.mxu0 0.0
  %433 = vmatprep.subr.mxu0 0.0
  %434 = vmatpush1.msra.mxu0 0.0
  %435 = vmatprep.subr.mxu0 0.0
  %436 = vmatpush1.msra.mxu0 0.0
  %437 = vmatprep.subr.mxu0 0.0
  %438 = vmatpush1.msra.mxu0 0.0
  %439 = vmatprep.subr.mxu0 0.0
  %440 = vmatpush1.msra.mxu0 0.0
  %441 = vmatprep.subr.mxu0 0.0
  %442 = vmatpush1.msra.mxu0 0.0
  %443 = vmatprep.subr.mxu0 0.0
  %444 = vmatpush1.msra.mxu0 0.0
  %445 = vmatprep.subr.mxu0 0.0
  %446 = vmatpush1.msra.mxu0 0.0
  %447 = vmatprep.subr.mxu0 0.0
  %448 = vmatpush1.msra.mxu0 0.0
  %449 = vmatprep.subr.mxu0 0.0
  %450 = vmatpush1.msra.mxu0 0.0
  %451 = vmatprep.subr.mxu0 0.0
  %452 = vmatpush1.msra.mxu0 0.0
  %453 = vmatprep.subr.mxu0 0.0
  %454 = vmatpush1.msra.mxu0 0.0
  %455 = vmatprep.subr.mxu0 0.0
  %456 = vmatpush1.msra.mxu0 0.0
  %457 = vmatprep.subr.mxu0 0.0
  %458 = vmatpush1.msra.mxu0 0.0
  %459 = vmatprep.subr.mxu0 0.0
  %460 = vmatpush1.msra.mxu0 0.0
  %461 = vmatprep.subr.mxu0 0.0
  %462 = vmatpush1.msra.mxu0 0.0
  %463 = vmatprep.subr.mxu0 0.0
  %464 = vmatpush1.msra.mxu0 0.0
  %465 = vmatprep.subr.mxu0 0.0
  %466 = vmatpush1.msra.mxu0 0.0
  %467 = vmatprep.mubr.f32.mxu0 0.0
  %468 = vmatmul.mubr.f32.gmra.mrb[0].mxu0 %v259
  %v469 = vpop.f32.mrb[0].mxu0
  %v470 = vadd.f32 %v255, %v469
  %v471 = vpop.f32.mrb[0].mxu0
  %v472 = vadd.f32 %v255, %v471
  %473 = vdwg.mxu0
  %474 = vmatprep.subr.mxu0 %v21
  %475 = vmatpush1.msra.mxu0 %v20
  %476 = vmatprep.subr.mxu0 %v175
  %477 = vmatpush1.msra.mxu0 %v174
  %478 = vmatprep.subr.mxu0 %v208
  %479 = vmatpush1.msra.mxu0 %v207
  %480 = vmatprep.subr.mxu0 %v249
  %481 = vmatpush1.msra.mxu0 %v248
  %482 = vmatprep.subr.mxu0 0.0
  %483 = vmatpush1.msra.mxu0 0.0
  %484 = vmatprep.subr.mxu0 0.0
  %485 = vmatpush1.msra.mxu0 0.0
  %486 = vmatprep.subr.mxu0 0.0
  %487 = vmatpush1.msra.mxu0 0.0
  %488 = vmatprep.subr.mxu0 0.0
  %489 = vmatpush1.msra.mxu0 0.0
  %490 = vmatprep.subr.mxu0 0.0
  %491 = vmatpush1.msra.mxu0 0.0
  %492 = vmatprep.subr.mxu0 0.0
  %493 = vmatpush1.msra.mxu0 0.0
  %494 = vmatprep.subr.mxu0 0.0
  %495 = vmatpush1.msra.mxu0 0.0
  %496 = vmatprep.subr.mxu0 0.0
  %497 = vmatpush1.msra.mxu0 0.0
  %498 = vmatprep.subr.mxu0 0.0
  %499 = vmatpush1.msra.mxu0 0.0
  %500 = vmatprep.subr.mxu0 0.0
  %501 = vmatpush1.msra.mxu0 0.0
  %502 = vmatprep.subr.mxu0 0.0
  %503 = vmatpush1.msra.mxu0 0.0
  %504 = vmatprep.subr.mxu0 0.0
  %505 = vmatpush1.msra.mxu0 0.0
  %506 = vmatprep.subr.mxu0 0.0
  %507 = vmatpush1.msra.mxu0 0.0
  %508 = vmatprep.subr.mxu0 0.0
  %509 = vmatpush1.msra.mxu0 0.0
  %510 = vmatprep.subr.mxu0 0.0
  %511 = vmatpush1.msra.mxu0 0.0
  %512 = vmatprep.subr.mxu0 0.0
  %513 = vmatpush1.msra.mxu0 0.0
  %514 = vmatprep.subr.mxu0 0.0
  %515 = vmatpush1.msra.mxu0 0.0
  %516 = vmatprep.subr.mxu0 0.0
  %517 = vmatpush1.msra.mxu0 0.0
  %518 = vmatprep.subr.mxu0 0.0
  %519 = vmatpush1.msra.mxu0 0.0
  %520 = vmatprep.subr.mxu0 0.0
  %521 = vmatpush1.msra.mxu0 0.0
  %522 = vmatprep.subr.mxu0 0.0
  %523 = vmatpush1.msra.mxu0 0.0
  %524 = vmatprep.subr.mxu0 0.0
  %525 = vmatpush1.msra.mxu0 0.0
  %526 = vmatprep.subr.mxu0 0.0
  %527 = vmatpush1.msra.mxu0 0.0
  %528 = vmatprep.subr.mxu0 0.0
  %529 = vmatpush1.msra.mxu0 0.0
  %530 = vmatprep.subr.mxu0 0.0
  %531 = vmatpush1.msra.mxu0 0.0
  %532 = vmatprep.subr.mxu0 0.0
  %533 = vmatpush1.msra.mxu0 0.0
  %534 = vmatprep.subr.mxu0 0.0
  %535 = vmatpush1.msra.mxu0 0.0
  %536 = vmatprep.subr.mxu0 0.0
  %537 = vmatpush1.msra.mxu0 0.0
  %538 = vmatprep.mubr.f32.mxu0 0.0
  %539 = vmatmul.mubr.f32.gmra.mrb[0].mxu0 %v259
  %v540 = vpop.f32.mrb[0].mxu0
  %v541 = vadd.f32 %v255, %v540
  %v542 = vpop.f32.mrb[0].mxu0
  %v543 = vadd.f32 %v255, %v542
  %544 = vdwg.mxu0
  %545 = vst [vmem:[%s3] sm:$0xff] %v328
  %546 = vst [vmem:[%s3 + $0x8] sm:$0xff] %v330
  %547 = vst [vmem:[%s3 + $0x10] sm:$0xff] %v399
  %548 = vst [vmem:[%s3 + $0x18] sm:$0xff] %v401
  %549 = vst [vmem:[%s3 + $0x20] sm:$0xff] %v470
  %550 = vst [vmem:[%s3 + $0x28] sm:$0xff] %v472
  %551 = vst [vmem:[%s3 + $0x30] sm:$0xff] %v541
  %552 = vst [vmem:[%s3 + $0x38] sm:$0xff] %v543
  // Predicated region
  $region14: #{conv_transpose_plus3.1} parent=0 // pred_check
    _
  $region15: #{conv_transpose_plus3.1} parent=0 // pred_check_branch
    %554 = sbr.rel (0) target = $region17
  $region16: #{conv_transpose_plus3.1} parent=0 // pred_region
    _
  $region17: #{conv_transpose_plus3.1} parent=0 // pred_fallthru
    _
  // Predicated region
  $region18: #{conv_transpose_plus3.1} parent=0 // pred_check
    _
  $region19: #{conv_transpose_plus3.1} parent=0 // pred_check_branch
    %556 = sbr.rel (0) target = $region21
  $region20: #{conv_transpose_plus3.1} parent=0 // pred_region
    _
  $region21: #{conv_transpose_plus3.1} parent=0 // pred_fallthru
    _

</llo_original>
